<compile_context>
chip_gen: v7x
topology: tpu7x:2x2x1
jax: 0.10.0
libtpu: 0.0.40
codegen_flags: <defaults>
</compile_context>

<pallas_src>
import functools

import jax
import jax.numpy as jnp
from jax.experimental import pallas as pl
from jax.experimental.pallas import tpu as pltpu


def _cos_loss_kernel(pv_ref, y_ref, yp_ref, out_ref, acc_ref, cnt_ref,
                     *, n_valid, tile_n, precision):
    i = pl.program_id(0)
    last = i == pl.num_programs(0) - 1

    @pl.when(i == 0)
    def _init():
        acc_ref[...] = jnp.zeros_like(acc_ref)
        cnt_ref[0] = jnp.float32(0.0)
        cnt_ref[1] = jnp.float32(0.0)

    def accumulate(pos_m, neg_m, pos_mp, neg_mp, pv):
        # counts: cheap lane reductions accumulated in SMEM
        cnt_ref[0] += jnp.sum(pos_m)
        cnt_ref[1] += jnp.sum(pos_mp)
        # all four masked feature sums as ONE small MXU matmul:
        #   (4, TN) mask matrix @ (TN, D) p_v tile  ->  (4, D) f32 partials
        masks = jnp.concatenate([pos_m, neg_m, pos_mp, neg_mp], axis=0)
        acc_ref[...] += jnp.dot(masks.astype(pv.dtype), pv,
                                preferred_element_type=jnp.float32,
                                precision=precision)

    @pl.when(jnp.logical_not(last))
    def _interior():
        # interior tiles are fully valid: raw sign masks only (no iota work)
        y = y_ref[...]                                        # (1, TN) f32
        yp = yp_ref[...]
        pos_m = jnp.where(y >= 0.0, 1.0, 0.0)
        neg_m = jnp.where(y < 0.0, 1.0, 0.0)
        pos_mp = jnp.where(yp >= 0.0, 1.0, 0.0)
        neg_mp = jnp.where(yp < 0.0, 1.0, 0.0)
        accumulate(pos_m, neg_m, pos_mp, neg_mp, pv_ref[...])

    @pl.when(last)
    def _last_and_finalize():
        # ---- ragged-tail handling (only on the last tile) -----------------
        y = y_ref[...]
        yp = yp_ref[...]
        lane = jax.lax.broadcasted_iota(jnp.int32, (1, tile_n), 1)
        valid = (i * tile_n + lane) < n_valid                 # (1, TN) bool
        pos_m = jnp.where(valid & (y >= 0.0), 1.0, 0.0)
        neg_m = jnp.where(valid & (y < 0.0), 1.0, 0.0)
        pos_mp = jnp.where(valid & (yp >= 0.0), 1.0, 0.0)
        neg_mp = jnp.where(valid & (yp < 0.0), 1.0, 0.0)
        # zero the tail rows of the p_v tile: the block may extend past the
        # array, and 0 * garbage (NaN) would poison the MXU accumulation.
        row = jax.lax.broadcasted_iota(jnp.int32, pv_ref.shape, 0)
        pv = jnp.where(i * tile_n + row < n_valid,
                       pv_ref[...], jnp.zeros_like(pv_ref))
        accumulate(pos_m, neg_m, pos_mp, neg_mp, pv)

        # ---- finalize: means, gated cosine terms, final scalar ------------
        sums = acc_ref[...]                                   # (4, D) f32
        pos_sum = sums[0:1, :]
        neg_sum = sums[1:2, :]
        posp_sum = sums[2:3, :]
        negp_sum = sums[3:4, :]

        n_tot = jnp.float32(n_valid)
        n_pos = cnt_ref[0]
        n_pos_p = cnt_ref[1]
        n_neg = n_tot - n_pos
        n_neg_p = n_tot - n_pos_p

        pos_avg = pos_sum / jnp.maximum(n_pos, 1.0)           # safe divides;
        neg_avg = neg_sum / jnp.maximum(n_neg, 1.0)           # empty groups are
        pos_avg_p = posp_sum / jnp.maximum(n_pos_p, 1.0)      # gated to 0 below
        neg_avg_p = negp_sum / jnp.maximum(n_neg_p, 1.0)

        eps = jnp.float32(1e-8)  # torch.cosine_similarity default eps

        def cos_sim(a, b):
            dot = jnp.sum(a * b)
            nrm = jnp.sqrt(jnp.sum(a * a)) * jnp.sqrt(jnp.sum(b * b))
            return dot / jnp.maximum(nrm, eps)                # product clamp

        cos_pos = jnp.where((n_pos > 0.0) & (n_pos_p > 0.0),
                            1.0 - cos_sim(pos_avg, pos_avg_p), 0.0)
        cos_neg = jnp.where((n_neg > 0.0) & (n_neg_p > 0.0),
                            1.0 - cos_sim(neg_avg, neg_avg_p), 0.0)
        out_ref[0, 0] = (n_pos * cos_pos + n_neg * cos_neg) / n_tot


def cos_loss_pallas(p_v, y, y_pred, *, tile_rows=None,
                    target_tile_bytes=2 * 1024 * 1024):
    """Polar/cosine loss.  p_v: (N, D) features (streamed in native dtype);
    y, y_pred: (N,) scores.  Returns a scalar f32 loss."""
    p_v = jnp.asarray(p_v)                       # do NOT upcast; stream native dtype
    N, D = p_v.shape
    y_row = jnp.asarray(y, jnp.float32).reshape(1, N)
    yp_row = jnp.asarray(y_pred, jnp.float32).reshape(1, N)

    # ---- tile sizing by bytes (HBM streaming), v7x-VMEM-safe -----------------
    dtype_bytes = jnp.dtype(p_v.dtype).itemsize
    d_lanes = ((D + 127) // 128) * 128           # lane padding when D < 128
    row_bytes = d_lanes * dtype_bytes

    if tile_rows is not None:
        tn = min(int(tile_rows), N)
        if tn < N:
            assert tn % 128 == 0, "multi-tile tile_rows must be a multiple of 128"
    elif N * row_bytes <= target_tile_bytes:
        tn = N                                   # single tile == full array
    else:
        tn = max(128, (target_tile_bytes // row_bytes) // 128 * 128)
        # keep 2x (double-buffer) tiles comfortably inside v7x's 64 MiB VMEM
        cap_rows = max(128, ((8 * 1024 * 1024) // row_bytes) // 128 * 128)
        tn = min(tn, cap_rows)
    steps = -(-N // tn)

    tile_bytes = tn * row_bytes
    est_vmem = 2 * tile_bytes + 4 * tn * 4 * 2 + 8 * d_lanes * 4 + 4096
    vmem_limit = None
    if est_vmem > 16 * 1024 * 1024:              # only raise when actually needed;
        vmem_limit = min(int(est_vmem * 3 // 2), 32 * 1024 * 1024)  # v7x-safe cap

    precision = (jax.lax.Precision.HIGHEST
                 if p_v.dtype == jnp.float32 else None)

    kernel = functools.partial(_cos_loss_kernel, n_valid=N, tile_n=tn,
                               precision=precision)

    out = pl.pallas_call(
        kernel,
        out_shape=jax.ShapeDtypeStruct((1, 1), jnp.float32),
        grid_spec=pltpu.PrefetchScalarGridSpec(
            num_scalar_prefetch=0,
            grid=(steps,),
            in_specs=[
                pl.BlockSpec((tn, D), lambda i: (i, 0)),      # p_v tile (native dtype)
                pl.BlockSpec((1, tn), lambda i: (0, i)),      # y (lane-major)
                pl.BlockSpec((1, tn), lambda i: (0, i)),      # y_pred (lane-major)
            ],
            out_specs=pl.BlockSpec((1, 1), lambda i: (0, 0),
                                   memory_space=pltpu.MemorySpace.SMEM),
            scratch_shapes=[
                pltpu.VMEM((4, D), jnp.float32),   # pos / neg / pos_pred / neg_pred sums
                pltpu.SMEM((2,), jnp.float32),     # n_pos, n_pos_pred
            ],
        ),
        compiler_params=pltpu.CompilerParams(
            dimension_semantics=("arbitrary",),
            vmem_limit_bytes=vmem_limit,
        ),
    )(p_v, y_row, yp_row)
    return out[0, 0]


def _cos_loss_ref(p_v, y, y_pred):
    # pure-JAX reference with the same masked-mean / gating semantics
    p_v = jnp.asarray(p_v, jnp.float32)
    y = jnp.asarray(y, jnp.float32)
    y_pred = jnp.asarray(y_pred, jnp.float32)
    n = p_v.shape[0]

    def group(mask):
        cnt = jnp.sum(mask)
        avg = jnp.sum(p_v * mask[:, None], axis=0) / jnp.maximum(cnt, 1.0)
        return cnt, avg

    n_pos, pos_avg = group((y >= 0).astype(jnp.float32))
    n_neg, neg_avg = group((y < 0).astype(jnp.float32))
    n_pos_p, pos_avg_p = group((y_pred >= 0).astype(jnp.float32))
    n_neg_p, neg_avg_p = group((y_pred < 0).astype(jnp.float32))

    def cs(a, b):
        eps = 1e-8
        nrm = jnp.linalg.norm(a) * jnp.linalg.norm(b)
        return jnp.dot(a, b) / jnp.maximum(nrm, eps)

    cp = jnp.where((n_pos > 0) & (n_pos_p > 0), 1.0 - cs(pos_avg, pos_avg_p), 0.0)
    cn = jnp.where((n_neg > 0) & (n_neg_p > 0), 1.0 - cs(neg_avg, neg_avg_p), 0.0)
    return (n_pos * cp + n_neg * cn) / n


if __name__ == "__main__":
    key = jax.random.PRNGKey(0)
    k1, k2, k3 = jax.random.split(key, 3)

    # Test 1: small single-tile path, bf16 p_v streamed natively.
    N, D = 8, 32
    p_v_bf16 = jax.random.normal(k1, (N, D), dtype=jnp.float32).astype(jnp.bfloat16)
    y = jax.random.normal(k2, (N,), dtype=jnp.float32)
    y_pred = jax.random.normal(k3, (N,), dtype=jnp.float32)

    loss = cos_loss_pallas(p_v_bf16, y, y_pred)
    jax.block_until_ready(loss)
    ref = _cos_loss_ref(p_v_bf16.astype(jnp.float32), y, y_pred)
    assert jnp.allclose(loss, ref, atol=1e-4, rtol=1e-4), (loss, ref)

    # Test 2: multi-tile grid with a ragged last tile (no wrapper-side padding),
    # true f32 p_v exercising the precision=HIGHEST MXU path.
    k4, k5, k6 = jax.random.split(jax.random.PRNGKey(1), 3)
    N2, D2 = 300, 32
    p_v2 = jax.random.normal(k4, (N2, D2), dtype=jnp.float32)
    y2 = jax.random.normal(k5, (N2,), dtype=jnp.float32)
    y_pred2 = jax.random.normal(k6, (N2,), dtype=jnp.float32)

    loss2 = cos_loss_pallas(p_v2, y2, y_pred2, tile_rows=128)
    jax.block_until_ready(loss2)
    ref2 = _cos_loss_ref(p_v2, y2, y_pred2)
    assert jnp.allclose(loss2, ref2, atol=1e-4, rtol=1e-4), (loss2, ref2)

    # Test 3: empty-group gating (all y >= 0 -> negative cos term contributes 0).
    y3 = jnp.abs(y2)
    loss3 = cos_loss_pallas(p_v2, y3, y_pred2, tile_rows=128)
    jax.block_until_ready(loss3)
    ref3 = _cos_loss_ref(p_v2, y3, y_pred2)
    assert jnp.allclose(loss3, ref3, atol=1e-4, rtol=1e-4), (loss3, ref3)

    print("KERNEL_OK")
</pallas_src>

<mosaic_0001>
module attributes {stable_mosaic.version = 11 : i64} {
  func.func @_cos_loss_kernel(%arg0: i32, %arg1: memref<8x32xbf16, #tpu.memory_space<vmem>>, %arg2: memref<1x8xf32, #tpu.memory_space<vmem>>, %arg3: memref<1x8xf32, #tpu.memory_space<vmem>>, %arg4: memref<1x1xf32, #tpu.memory_space<smem>>, %arg5: memref<4x32xf32, #tpu.memory_space<vmem>>, %arg6: memref<2xf32, #tpu.memory_space<smem>>) attributes {dimension_semantics = [#tpu.dimension_semantics<arbitrary>], iteration_bounds = array<i64: 1>, scalar_prefetch = 0 : i64, scratch_operands = 2 : i64, tpu.core_type = #tpu.core_type<tc>, window_params = [{transform_indices = @transform_0, window_bounds = array<i64: 8, 32>}, {transform_indices = @transform_1, window_bounds = array<i64: 1, 8>}, {transform_indices = @transform_2, window_bounds = array<i64: 1, 8>}, {transform_indices = @transform_3, window_bounds = array<i64: 1, 1>}]} {
    %c0_i32 = arith.constant 0 : i32
    %0 = arith.cmpi eq, %arg0, %c0_i32 : i32
    %c0_i32_0 = arith.constant 0 : i32
    %1 = arith.cmpi eq, %arg0, %c0_i32_0 : i32
    %2 = arith.extui %1 : i1 to i32
    %c0_i32_1 = arith.constant 0 : i32
    %3 = arith.cmpi ne, %2, %c0_i32_1 : i32
    scf.if %3 {
      %cst = arith.constant 0.000000e+00 : f32
      %9 = vector.broadcast %cst : f32 to vector<4x32xf32>
      %c0 = arith.constant 0 : index
      %c0_4 = arith.constant 0 : index
      %10 = vector.load %arg5[%c0, %c0_4] : memref<4x32xf32, #tpu.memory_space<vmem>>, vector<4x32xf32>
      tpu.vector_store %arg5[%c0, %c0_4], %9 {strides = array<i32>} : memref<4x32xf32, #tpu.memory_space<vmem>>, vector<4x32xf32>,
      %cst_5 = arith.constant 0.000000e+00 : f32
      %c0_6 = arith.constant 0 : index
      %11 = memref.load %arg6[%c0_6] : memref<2xf32, #tpu.memory_space<smem>>
      memref.store %cst_5, %arg6[%c0_6] : memref<2xf32, #tpu.memory_space<smem>>
      %cst_7 = arith.constant 0.000000e+00 : f32
      %c1 = arith.constant 1 : index
      %12 = memref.load %arg6[%c1] : memref<2xf32, #tpu.memory_space<smem>>
      memref.store %cst_7, %arg6[%c1] : memref<2xf32, #tpu.memory_space<smem>>
    } else {
    }
    %true = arith.constant true
    %4 = arith.xori %0, %true : i1
    %5 = arith.extui %4 : i1 to i32
    %c0_i32_2 = arith.constant 0 : i32
    %6 = arith.cmpi ne, %5, %c0_i32_2 : i32
    scf.if %6 {
      %c0 = arith.constant 0 : index
      %c0_4 = arith.constant 0 : index
      %9 = vector.load %arg2[%c0, %c0_4] : memref<1x8xf32, #tpu.memory_space<vmem>>, vector<1x8xf32>
      %c0_5 = arith.constant 0 : index
      %c0_6 = arith.constant 0 : index
      %10 = vector.load %arg3[%c0_5, %c0_6] : memref<1x8xf32, #tpu.memory_space<vmem>>, vector<1x8xf32>
      %cst = arith.constant 0.000000e+00 : f32
      %11 = vector.broadcast %cst : f32 to vector<1x8xf32>
      %12 = arith.cmpf oge, %9, %11 : vector<1x8xf32>
      %cst_7 = arith.constant 1.000000e+00 : f32
      %cst_8 = arith.constant 0.000000e+00 : f32
      %13 = vector.broadcast %cst_7 : f32 to vector<1x8xf32>
      %14 = vector.broadcast %cst_8 : f32 to vector<1x8xf32>
      %15 = arith.select %12, %13, %14 : vector<1x8xi1>, vector<1x8xf32>
      %cst_9 = arith.constant 0.000000e+00 : f32
      %16 = vector.broadcast %cst_9 : f32 to vector<1x8xf32>
      %17 = arith.cmpf olt, %9, %16 : vector<1x8xf32>
      %cst_10 = arith.constant 1.000000e+00 : f32
      %cst_11 = arith.constant 0.000000e+00 : f32
      %18 = vector.broadcast %cst_10 : f32 to vector<1x8xf32>
      %19 = vector.broadcast %cst_11 : f32 to vector<1x8xf32>
      %20 = arith.select %17, %18, %19 : vector<1x8xi1>, vector<1x8xf32>
      %cst_12 = arith.constant 0.000000e+00 : f32
      %21 = vector.broadcast %cst_12 : f32 to vector<1x8xf32>
      %22 = arith.cmpf oge, %10, %21 : vector<1x8xf32>
      %cst_13 = arith.constant 1.000000e+00 : f32
      %cst_14 = arith.constant 0.000000e+00 : f32
      %23 = vector.broadcast %cst_13 : f32 to vector<1x8xf32>
      %24 = vector.broadcast %cst_14 : f32 to vector<1x8xf32>
      %25 = arith.select %22, %23, %24 : vector<1x8xi1>, vector<1x8xf32>
      %cst_15 = arith.constant 0.000000e+00 : f32
      %26 = vector.broadcast %cst_15 : f32 to vector<1x8xf32>
      %27 = arith.cmpf olt, %10, %26 : vector<1x8xf32>
      %cst_16 = arith.constant 1.000000e+00 : f32
      %cst_17 = arith.constant 0.000000e+00 : f32
      %28 = vector.broadcast %cst_16 : f32 to vector<1x8xf32>
      %29 = vector.broadcast %cst_17 : f32 to vector<1x8xf32>
      %30 = arith.select %27, %28, %29 : vector<1x8xi1>, vector<1x8xf32>
      %c0_18 = arith.constant 0 : index
      %c0_19 = arith.constant 0 : index
      %31 = vector.load %arg1[%c0_18, %c0_19] : memref<8x32xbf16, #tpu.memory_space<vmem>>, vector<8x32xbf16>
      %c0_20 = arith.constant 0 : index
      %32 = memref.load %arg6[%c0_20] : memref<2xf32, #tpu.memory_space<smem>>
      %33 = vector.shape_cast %15 : vector<1x8xf32> to vector<1x1x8xf32>
      %cst_21 = arith.constant dense<0.000000e+00> : vector<1xf32>
      %34 = vector.multi_reduction <add>, %33, %cst_21 [1, 2] : vector<1x1x8xf32> to vector<1xf32>
      %35 = vector.shape_cast %34 : vector<1xf32> to vector<1x1x1xf32>
      %36 = vector.extract %35[0, 0, 0] : f32 from vector<1x1x1xf32>
      %37 = arith.addf %32, %36 : f32
      %c0_22 = arith.constant 0 : index
      %38 = memref.load %arg6[%c0_22] : memref<2xf32, #tpu.memory_space<smem>>
      memref.store %37, %arg6[%c0_22] : memref<2xf32, #tpu.memory_space<smem>>
      %c1 = arith.constant 1 : index
      %39 = memref.load %arg6[%c1] : memref<2xf32, #tpu.memory_space<smem>>
      %40 = vector.shape_cast %25 : vector<1x8xf32> to vector<1x1x8xf32>
      %cst_23 = arith.constant dense<0.000000e+00> : vector<1xf32>
      %41 = vector.multi_reduction <add>, %40, %cst_23 [1, 2] : vector<1x1x8xf32> to vector<1xf32>
      %42 = vector.shape_cast %41 : vector<1xf32> to vector<1x1x1xf32>
      %43 = vector.extract %42[0, 0, 0] : f32 from vector<1x1x1xf32>
      %44 = arith.addf %39, %43 : f32
      %c1_24 = arith.constant 1 : index
      %45 = memref.load %arg6[%c1_24] : memref<2xf32, #tpu.memory_space<smem>>
      memref.store %44, %arg6[%c1_24] : memref<2xf32, #tpu.memory_space<smem>>
      %46 = tpu.concatenate %15, %20, %25, %30 in 0 : vector<1x8xf32>, vector<1x8xf32>, vector<1x8xf32>, vector<1x8xf32> -> vector<4x8xf32>
      %c0_25 = arith.constant 0 : index
      %c0_26 = arith.constant 0 : index
      %47 = vector.load %arg5[%c0_25, %c0_26] : memref<4x32xf32, #tpu.memory_space<vmem>>, vector<4x32xf32>
      %48 = arith.truncf %46 : vector<4x8xf32> to vector<4x8xbf16>
      %cst_27 = arith.constant dense<0.000000e+00> : vector<4x32xf32>
      %49 = tpu.matmul %48, %31, %cst_27 {dimension_numbers = #tpu.dot_dimension_numbers<[1], [0], [0], [1], [0, 0, 1, 1], [], []>} : vector<4x8xbf16>, vector<8x32xbf16>, vector<4x32xf32> -> vector<4x32xf32>
      %50 = arith.addf %47, %49 : vector<4x32xf32>
      %c0_28 = arith.constant 0 : index
      %c0_29 = arith.constant 0 : index
      %51 = vector.load %arg5[%c0_28, %c0_29] : memref<4x32xf32, #tpu.memory_space<vmem>>, vector<4x32xf32>
      tpu.vector_store %arg5[%c0_28, %c0_29], %50 {strides = array<i32>} : memref<4x32xf32, #tpu.memory_space<vmem>>, vector<4x32xf32>,
    } else {
    }
    %7 = arith.extui %0 : i1 to i32
    %c0_i32_3 = arith.constant 0 : i32
    %8 = arith.cmpi ne, %7, %c0_i32_3 : i32
    scf.if %8 {
      %c0 = arith.constant 0 : index
      %c0_4 = arith.constant 0 : index
      %9 = vector.load %arg2[%c0, %c0_4] : memref<1x8xf32, #tpu.memory_space<vmem>>, vector<1x8xf32>
      %c0_5 = arith.constant 0 : index
      %c0_6 = arith.constant 0 : index
      %10 = vector.load %arg3[%c0_5, %c0_6] : memref<1x8xf32, #tpu.memory_space<vmem>>, vector<1x8xf32>
      %11 = tpu.iota {dimensions = array<i32: 1>} : vector<1x8xi32>
      %c8_i32 = arith.constant 8 : i32
      %12 = arith.muli %arg0, %c8_i32 : i32
      %13 = vector.broadcast %12 : i32 to vector<1x8xi32>
      %14 = arith.addi %13, %11 : vector<1x8xi32>
      %c8_i32_7 = arith.constant 8 : i32
      %15 = vector.broadcast %c8_i32_7 : i32 to vector<1x8xi32>
      %16 = arith.cmpi slt, %14, %15 : vector<1x8xi32>
      %cst = arith.constant 0.000000e+00 : f32
      %17 = vector.broadcast %cst : f32 to vector<1x8xf32>
      %18 = arith.cmpf oge, %9, %17 : vector<1x8xf32>
      %19 = arith.andi %16, %18 : vector<1x8xi1>
      %cst_8 = arith.constant 1.000000e+00 : f32
      %cst_9 = arith.constant 0.000000e+00 : f32
      %20 = vector.broadcast %cst_8 : f32 to vector<1x8xf32>
      %21 = vector.broadcast %cst_9 : f32 to vector<1x8xf32>
      %22 = arith.select %19, %20, %21 : vector<1x8xi1>, vector<1x8xf32>
      %cst_10 = arith.constant 0.000000e+00 : f32
      %23 = vector.broadcast %cst_10 : f32 to vector<1x8xf32>
      %24 = arith.cmpf olt, %9, %23 : vector<1x8xf32>
      %25 = arith.andi %16, %24 : vector<1x8xi1>
      %cst_11 = arith.constant 1.000000e+00 : f32
      %cst_12 = arith.constant 0.000000e+00 : f32
      %26 = vector.broadcast %cst_11 : f32 to vector<1x8xf32>
      %27 = vector.broadcast %cst_12 : f32 to vector<1x8xf32>
      %28 = arith.select %25, %26, %27 : vector<1x8xi1>, vector<1x8xf32>
      %cst_13 = arith.constant 0.000000e+00 : f32
      %29 = vector.broadcast %cst_13 : f32 to vector<1x8xf32>
      %30 = arith.cmpf oge, %10, %29 : vector<1x8xf32>
      %31 = arith.andi %16, %30 : vector<1x8xi1>
      %cst_14 = arith.constant 1.000000e+00 : f32
      %cst_15 = arith.constant 0.000000e+00 : f32
      %32 = vector.broadcast %cst_14 : f32 to vector<1x8xf32>
      %33 = vector.broadcast %cst_15 : f32 to vector<1x8xf32>
      %34 = arith.select %31, %32, %33 : vector<1x8xi1>, vector<1x8xf32>
      %cst_16 = arith.constant 0.000000e+00 : f32
      %35 = vector.broadcast %cst_16 : f32 to vector<1x8xf32>
      %36 = arith.cmpf olt, %10, %35 : vector<1x8xf32>
      %37 = arith.andi %16, %36 : vector<1x8xi1>
      %cst_17 = arith.constant 1.000000e+00 : f32
      %cst_18 = arith.constant 0.000000e+00 : f32
      %38 = vector.broadcast %cst_17 : f32 to vector<1x8xf32>
      %39 = vector.broadcast %cst_18 : f32 to vector<1x8xf32>
      %40 = arith.select %37, %38, %39 : vector<1x8xi1>, vector<1x8xf32>
      %41 = tpu.iota {dimensions = array<i32: 0>} : vector<8x32xi32>
      %c8_i32_19 = arith.constant 8 : i32
      %42 = arith.muli %arg0, %c8_i32_19 : i32
      %43 = vector.broadcast %42 : i32 to vector<8x32xi32>
      %44 = arith.addi %43, %41 : vector<8x32xi32>
      %c8_i32_20 = arith.constant 8 : i32
      %45 = vector.broadcast %c8_i32_20 : i32 to vector<8x32xi32>
      %46 = arith.cmpi slt, %44, %45 : vector<8x32xi32>
      %c0_21 = arith.constant 0 : index
      %c0_22 = arith.constant 0 : index
      %47 = vector.load %arg1[%c0_21, %c0_22] : memref<8x32xbf16, #tpu.memory_space<vmem>>, vector<8x32xbf16>
      %cst_23 = arith.constant 0.000000e+00 : bf16
      %48 = vector.broadcast %cst_23 : bf16 to vector<8x32xbf16>
      %49 = arith.select %46, %47, %48 : vector<8x32xi1>, vector<8x32xbf16>
      %c0_24 = arith.constant 0 : index
      %50 = memref.load %arg6[%c0_24] : memref<2xf32, #tpu.memory_space<smem>>
      %51 = vector.shape_cast %22 : vector<1x8xf32> to vector<1x1x8xf32>
      %cst_25 = arith.constant dense<0.000000e+00> : vector<1xf32>
      %52 = vector.multi_reduction <add>, %51, %cst_25 [1, 2] : vector<1x1x8xf32> to vector<1xf32>
      %53 = vector.shape_cast %52 : vector<1xf32> to vector<1x1x1xf32>
      %54 = vector.extract %53[0, 0, 0] : f32 from vector<1x1x1xf32>
      %55 = arith.addf %50, %54 : f32
      %c0_26 = arith.constant 0 : index
      %56 = memref.load %arg6[%c0_26] : memref<2xf32, #tpu.memory_space<smem>>
      memref.store %55, %arg6[%c0_26] : memref<2xf32, #tpu.memory_space<smem>>
      %c1 = arith.constant 1 : index
      %57 = memref.load %arg6[%c1] : memref<2xf32, #tpu.memory_space<smem>>
      %58 = vector.shape_cast %34 : vector<1x8xf32> to vector<1x1x8xf32>
      %cst_27 = arith.constant dense<0.000000e+00> : vector<1xf32>
      %59 = vector.multi_reduction <add>, %58, %cst_27 [1, 2] : vector<1x1x8xf32> to vector<1xf32>
      %60 = vector.shape_cast %59 : vector<1xf32> to vector<1x1x1xf32>
      %61 = vector.extract %60[0, 0, 0] : f32 from vector<1x1x1xf32>
      %62 = arith.addf %57, %61 : f32
      %c1_28 = arith.constant 1 : index
      %63 = memref.load %arg6[%c1_28] : memref<2xf32, #tpu.memory_space<smem>>
      memref.store %62, %arg6[%c1_28] : memref<2xf32, #tpu.memory_space<smem>>
      %64 = tpu.concatenate %22, %28, %34, %40 in 0 : vector<1x8xf32>, vector<1x8xf32>, vector<1x8xf32>, vector<1x8xf32> -> vector<4x8xf32>
      %c0_29 = arith.constant 0 : index
      %c0_30 = arith.constant 0 : index
      %65 = vector.load %arg5[%c0_29, %c0_30] : memref<4x32xf32, #tpu.memory_space<vmem>>, vector<4x32xf32>
      %66 = arith.truncf %64 : vector<4x8xf32> to vector<4x8xbf16>
      %cst_31 = arith.constant dense<0.000000e+00> : vector<4x32xf32>
      %67 = tpu.matmul %66, %49, %cst_31 {dimension_numbers = #tpu.dot_dimension_numbers<[1], [0], [0], [1], [0, 0, 1, 1], [], []>} : vector<4x8xbf16>, vector<8x32xbf16>, vector<4x32xf32> -> vector<4x32xf32>
      %68 = arith.addf %65, %67 : vector<4x32xf32>
      %c0_32 = arith.constant 0 : index
      %c0_33 = arith.constant 0 : index
      %69 = vector.load %arg5[%c0_32, %c0_33] : memref<4x32xf32, #tpu.memory_space<vmem>>, vector<4x32xf32>
      tpu.vector_store %arg5[%c0_32, %c0_33], %68 {strides = array<i32>} : memref<4x32xf32, #tpu.memory_space<vmem>>, vector<4x32xf32>,
      %c0_34 = arith.constant 0 : index
      %c0_35 = arith.constant 0 : index
      %70 = vector.load %arg5[%c0_34, %c0_35] : memref<4x32xf32, #tpu.memory_space<vmem>>, vector<4x32xf32>
      %71 = vector.extract_strided_slice %70 {offsets = [0, 0], sizes = [1, 32], strides = [1, 1]} : vector<4x32xf32> to vector<1x32xf32>
      %72 = vector.extract_strided_slice %70 {offsets = [1, 0], sizes = [1, 32], strides = [1, 1]} : vector<4x32xf32> to vector<1x32xf32>
      %73 = vector.extract_strided_slice %70 {offsets = [2, 0], sizes = [1, 32], strides = [1, 1]} : vector<4x32xf32> to vector<1x32xf32>
      %74 = vector.extract_strided_slice %70 {offsets = [3, 0], sizes = [1, 32], strides = [1, 1]} : vector<4x32xf32> to vector<1x32xf32>
      %c0_36 = arith.constant 0 : index
      %75 = memref.load %arg6[%c0_36] : memref<2xf32, #tpu.memory_space<smem>>
      %c1_37 = arith.constant 1 : index
      %76 = memref.load %arg6[%c1_37] : memref<2xf32, #tpu.memory_space<smem>>
      %cst_38 = arith.constant 8.000000e+00 : f32
      %77 = arith.subf %cst_38, %75 : f32
      %cst_39 = arith.constant 8.000000e+00 : f32
      %78 = arith.subf %cst_39, %76 : f32
      %cst_40 = arith.constant 1.000000e+00 : f32
      %79 = arith.maximumf %75, %cst_40 : f32
      %80 = vector.broadcast %79 : f32 to vector<1x32xf32>
      %81 = arith.divf %71, %80 : vector<1x32xf32>
      %cst_41 = arith.constant 1.000000e+00 : f32
      %82 = arith.maximumf %77, %cst_41 : f32
      %83 = vector.broadcast %82 : f32 to vector<1x32xf32>
      %84 = arith.divf %72, %83 : vector<1x32xf32>
      %cst_42 = arith.constant 1.000000e+00 : f32
      %85 = arith.maximumf %76, %cst_42 : f32
      %86 = vector.broadcast %85 : f32 to vector<1x32xf32>
      %87 = arith.divf %73, %86 : vector<1x32xf32>
      %cst_43 = arith.constant 1.000000e+00 : f32
      %88 = arith.maximumf %78, %cst_43 : f32
      %89 = vector.broadcast %88 : f32 to vector<1x32xf32>
      %90 = arith.divf %74, %89 : vector<1x32xf32>
      %cst_44 = arith.constant 0.000000e+00 : f32
      %91 = arith.cmpf ogt, %75, %cst_44 : f32
      %cst_45 = arith.constant 0.000000e+00 : f32
      %92 = arith.cmpf ogt, %76, %cst_45 : f32
      %93 = arith.andi %91, %92 : i1
      %94 = arith.mulf %81, %87 : vector<1x32xf32>
      %95 = vector.shape_cast %94 : vector<1x32xf32> to vector<1x1x32xf32>
      %cst_46 = arith.constant dense<0.000000e+00> : vector<1xf32>
      %96 = vector.multi_reduction <add>, %95, %cst_46 [1, 2] : vector<1x1x32xf32> to vector<1xf32>
      %97 = vector.shape_cast %96 : vector<1xf32> to vector<1x1x1xf32>
      %98 = vector.extract %97[0, 0, 0] : f32 from vector<1x1x1xf32>
      %99 = arith.mulf %81, %81 : vector<1x32xf32>
      %100 = vector.shape_cast %99 : vector<1x32xf32> to vector<1x1x32xf32>
      %cst_47 = arith.constant dense<0.000000e+00> : vector<1xf32>
      %101 = vector.multi_reduction <add>, %100, %cst_47 [1, 2] : vector<1x1x32xf32> to vector<1xf32>
      %102 = vector.shape_cast %101 : vector<1xf32> to vector<1x1x1xf32>
      %103 = vector.extract %102[0, 0, 0] : f32 from vector<1x1x1xf32>
      %104 = math.sqrt %103 : f32
      %105 = arith.mulf %87, %87 : vector<1x32xf32>
      %106 = vector.shape_cast %105 : vector<1x32xf32> to vector<1x1x32xf32>
      %cst_48 = arith.constant dense<0.000000e+00> : vector<1xf32>
      %107 = vector.multi_reduction <add>, %106, %cst_48 [1, 2] : vector<1x1x32xf32> to vector<1xf32>
      %108 = vector.shape_cast %107 : vector<1xf32> to vector<1x1x1xf32>
      %109 = vector.extract %108[0, 0, 0] : f32 from vector<1x1x1xf32>
      %110 = math.sqrt %109 : f32
      %111 = arith.mulf %104, %110 : f32
      %cst_49 = arith.constant 9.99999993E-9 : f32
      %112 = arith.maximumf %111, %cst_49 : f32
      %113 = arith.divf %98, %112 : f32
      %cst_50 = arith.constant 1.000000e+00 : f32
      %114 = arith.subf %cst_50, %113 : f32
      %cst_51 = arith.constant 0.000000e+00 : f32
      %115 = arith.select %93, %114, %cst_51 : f32
      %cst_52 = arith.constant 0.000000e+00 : f32
      %116 = arith.cmpf ogt, %77, %cst_52 : f32
      %cst_53 = arith.constant 0.000000e+00 : f32
      %117 = arith.cmpf ogt, %78, %cst_53 : f32
      %118 = arith.andi %116, %117 : i1
      %119 = arith.mulf %84, %90 : vector<1x32xf32>
      %120 = vector.shape_cast %119 : vector<1x32xf32> to vector<1x1x32xf32>
      %cst_54 = arith.constant dense<0.000000e+00> : vector<1xf32>
      %121 = vector.multi_reduction <add>, %120, %cst_54 [1, 2] : vector<1x1x32xf32> to vector<1xf32>
      %122 = vector.shape_cast %121 : vector<1xf32> to vector<1x1x1xf32>
      %123 = vector.extract %122[0, 0, 0] : f32 from vector<1x1x1xf32>
      %124 = arith.mulf %84, %84 : vector<1x32xf32>
      %125 = vector.shape_cast %124 : vector<1x32xf32> to vector<1x1x32xf32>
      %cst_55 = arith.constant dense<0.000000e+00> : vector<1xf32>
      %126 = vector.multi_reduction <add>, %125, %cst_55 [1, 2] : vector<1x1x32xf32> to vector<1xf32>
      %127 = vector.shape_cast %126 : vector<1xf32> to vector<1x1x1xf32>
      %128 = vector.extract %127[0, 0, 0] : f32 from vector<1x1x1xf32>
      %129 = math.sqrt %128 : f32
      %130 = arith.mulf %90, %90 : vector<1x32xf32>
      %131 = vector.shape_cast %130 : vector<1x32xf32> to vector<1x1x32xf32>
      %cst_56 = arith.constant dense<0.000000e+00> : vector<1xf32>
      %132 = vector.multi_reduction <add>, %131, %cst_56 [1, 2] : vector<1x1x32xf32> to vector<1xf32>
      %133 = vector.shape_cast %132 : vector<1xf32> to vector<1x1x1xf32>
      %134 = vector.extract %133[0, 0, 0] : f32 from vector<1x1x1xf32>
      %135 = math.sqrt %134 : f32
      %136 = arith.mulf %129, %135 : f32
      %cst_57 = arith.constant 9.99999993E-9 : f32
      %137 = arith.maximumf %136, %cst_57 : f32
      %138 = arith.divf %123, %137 : f32
      %cst_58 = arith.constant 1.000000e+00 : f32
      %139 = arith.subf %cst_58, %138 : f32
      %cst_59 = arith.constant 0.000000e+00 : f32
      %140 = arith.select %118, %139, %cst_59 : f32
      %141 = arith.mulf %75, %115 : f32
      %142 = arith.mulf %77, %140 : f32
      %143 = arith.addf %141, %142 : f32
      %cst_60 = arith.constant 8.000000e+00 : f32
      %144 = arith.divf %143, %cst_60 : f32
      %c0_61 = arith.constant 0 : index
      %c0_62 = arith.constant 0 : index
      %145 = memref.load %arg4[%c0_61, %c0_62] : memref<1x1xf32, #tpu.memory_space<smem>>
      memref.store %144, %arg4[%c0_61, %c0_62] : memref<1x1xf32, #tpu.memory_space<smem>>
    } else {
    }
    return
  }
  func.func @transform_0(%arg0: i32) -> (i32, i32) {
    %c0_i32 = arith.constant 0 : i32
    %c0_i32_0 = arith.constant 0 : i32
    return %arg0, %c0_i32 : i32, i32
  }
  func.func @transform_1(%arg0: i32) -> (i32, i32) {
    %c0_i32 = arith.constant 0 : i32
    %c0_i32_0 = arith.constant 0 : i32
    return %c0_i32, %arg0 : i32, i32
  }
  func.func @transform_2(%arg0: i32) -> (i32, i32) {
    %c0_i32 = arith.constant 0 : i32
    %c0_i32_0 = arith.constant 0 : i32
    return %c0_i32, %arg0 : i32, i32
  }
  func.func @transform_3(%arg0: i32) -> (i32, i32) {
    %c0_i32 = arith.constant 0 : i32
    %c0_i32_0 = arith.constant 0 : i32
    %c0_i32_1 = arith.constant 0 : i32
    return %c0_i32, %c0_i32_0 : i32, i32
  }
}

</mosaic_0001>

<llo_original>
// kernel: tpu_custom_call.1
$region0: #{tpu_custom_call.1}
  #allocation0 [shape = 'u32[]', space=smem, size = 0x4, offset = 0x4, fixed_abs, tag = 'smem constant byte address 0x4 - core index']
  #allocation1 [shape = 'u32[144,128]{1,0:T(1,128)}', space=vmem, size = 0x12000, scoped, tag = 'internal scratch']
  #allocation2 [shape = 'f32[4,32]{1,0:T(4,128)}', space=vmem, size = 0x800, scoped, tag = 'scratch operand']
  #allocation3 [shape = 'f32[2]{0:T(128)}', space=smem, size = 0x200, scoped, tag = 'scratch operand']
  %s0 = inlined_call_operand.hbm [shape: bf16[8,32], index: 0, kind: input, shape index: {}]
  %s1 = inlined_call_operand.vmem [shape: f32[1,8], index: 1, kind: input, shape index: {}]
  %s2 = inlined_call_operand.vmem [shape: f32[1,8], index: 2, kind: input, shape index: {}]
  %s3 = inlined_call_operand.hbm [shape: f32[1,1], index: 3, kind: output, shape index: {}]
  %s4 = sld [smem:[#allocation0]]
  $region38: #{tpu_custom_call.1} parent=0
    _
  %s6 = ssub.s32 1, %s4
  %s7 = scalar_select 0, %s6, %s4
  $region1: #{tpu_custom_call.1} parent=0
    #allocation4 [shape = 'u8[2048]{0}', space=vmem, size = 0x800, scoped, tag = 'input window, operand 0, single buffered']
    #allocation5 [shape = 's32[1]{0}', space=sflag, size = 0x4, scoped, tag = 'scoped memory for tpu_custom_call.1']
    #allocation6 [shape = 's32[1]{0}', space=sflag, size = 0x4, scoped, tag = 'scoped memory for tpu_custom_call.1']
    #allocation7 [shape = 'u8[512]{0}', space=smem, size = 0x200, scoped, tag = 'output window, operand 0, single buffered']
    %8 = vsyncpa [#allocation5], 0
    %9 = vsyncpa [#allocation6], 0
    // Predicated region
    $region2: #{tpu_custom_call.1} parent=1 // pred_check
      _
    $region3: #{tpu_custom_call.1} parent=1 // pred_check_branch
      %11 = sbr.rel (0) target = $region5
    $region4: #{tpu_custom_call.1} parent=1 // pred_region
      %s13 = ssub.s32 64, 64
      %14 = vsyncadd [#allocation5], %s13
      %s16 = sshll.u32 [#allocation4], 4
      %s17 = int_to_ptr.vmem [resolvable:$true] %s16
      %19 = dma.hbm_to_vmem [thread:$0]  %s0, 64, %s17, [#allocation5]
    $region5: #{tpu_custom_call.1} parent=1 // pred_fallthru
      _
    // Predicated region
    $region6: #{tpu_custom_call.1} parent=1 // pred_check
      _
    $region7: #{tpu_custom_call.1} parent=1 // pred_check_branch
      %21 = sbr.rel (0) target = $region9
    $region8: #{tpu_custom_call.1} parent=1 // pred_region
      _
    $region9: #{tpu_custom_call.1} parent=1 // pred_fallthru
      _
    // Predicated region
    $region10: #{tpu_custom_call.1} parent=1 // pred_check
      _
    $region11: #{tpu_custom_call.1} parent=1 // pred_check_branch
      %23 = sbr.rel (0) target = $region13
    $region12: #{tpu_custom_call.1} parent=1 // pred_region
      _
    $region13: #{tpu_custom_call.1} parent=1 // pred_fallthru
      _
    // Predicated region
    $region14: #{tpu_custom_call.1} parent=1 // pred_check
      _
    $region15: #{tpu_custom_call.1} parent=1 // pred_check_branch
      %25 = sbr.rel (0) target = $region17
    $region16: #{tpu_custom_call.1} parent=1 // pred_region
      %26 = dma.done [#allocation5], 64
    $region17: #{tpu_custom_call.1} parent=1 // pred_fallthru
      _
    %p28 = scmp.eq.s32.totalorder 0, 0
    // Predicated region
    $region18: #{tpu_custom_call.1} parent=1 // pred_check
      %p29 = pneg %p28
    $region19: #{tpu_custom_call.1} parent=1 // pred_check_branch
      %31 = sbr.rel (%p29) target = $region21
    $region20: #{tpu_custom_call.1} parent=1 // pred_region
      %vm32 = vcmask 257024
      %33 = vst.msk [vmem:[#allocation2] sm:$0xf] %vm32, 0.0
      %s34 = scalar_lea.smem [#allocation3], 0
      %35 = sst [smem:[%s34]] 0.0
      %s36 = scalar_lea.smem [#allocation3], 1
      %37 = sst [smem:[%s36]] 0.0
    $region21: #{tpu_custom_call.1} parent=1 // pred_fallthru
      _
    %p38 = scmp.ne.s32.totalorder 0, 0
    // Predicated region
    $region22: #{tpu_custom_call.1} parent=1 // pred_check
      %p39 = pneg %p38
    $region23: #{tpu_custom_call.1} parent=1 // pred_check_branch
      %41 = sbr.rel (%p39) target = $region25
    $region24: #{tpu_custom_call.1} parent=1 // pred_region
      %v42 = vld [vmem:[%s1] sm:$0x1]
      %v43 = vld [vmem:[%s2] sm:$0x1]
      %vm44 = vcmp.ge.f32.partialorder %v42, 0.0
      %v45 = vsel %vm44, 1.0, 0.0
      %vm46 = vcmp.lt.f32.partialorder %v42, 0.0
      %v47 = vsel %vm46, 1.0, 0.0
      %vm48 = vcmp.ge.f32.partialorder %v43, 0.0
      %v49 = vsel %vm48, 1.0, 0.0
      %vm50 = vcmp.lt.f32.partialorder %v43, 0.0
      %v51 = vsel %vm50, 1.0, 0.0
      %v52 = vld [vmem:[#allocation4] sm:$0xf]
      %s53 = sld [smem:[#allocation3]]
      %vm54 = vcmask 57344
      %v55 = vsel %vm54, %v45, 0.0
      %56 = vadd.xlane.f32.xlu0 %v55
      %v57 = vpop.xlane.xlu0 %56
      %v58 = vrot.slane %v57, 4
      %v59 = vadd.f32 %v57, %v58
      %v60 = vrot.slane %v59, 2
      %v61 = vadd.f32 %v59, %v60
      %v62 = vrot.slane %v61, 1
      %v63 = vadd.f32 %v61, %v62
      %s64 = vtos %v63
      %s65 = sadd.f32 %s53, %s64
      %s66 = scalar_lea.smem [#allocation3], 0
      %67 = sst [smem:[%s66]] %s65
      %s68 = sld [smem:[#allocation3 + $0x1]]
      %v69 = vsel %vm54, %v49, 0.0
      %70 = vadd.xlane.f32.xlu0 %v69
      %v71 = vpop.xlane.xlu0 %70
      %v72 = vrot.slane %v71, 4
      %v73 = vadd.f32 %v71, %v72
      %v74 = vrot.slane %v73, 2
      %v75 = vadd.f32 %v73, %v74
      %v76 = vrot.slane %v75, 1
      %v77 = vadd.f32 %v75, %v76
      %s78 = vtos %v77
      %s79 = sadd.f32 %s68, %s78
      %s80 = scalar_lea.smem [#allocation3], 1
      %81 = sst [smem:[%s80]] %s79
      %v83 = vlaneseq
      %v84 = vshrl.u32 %v83, 7
      %v85 = vsub.s32 0, %v84
      %v86 = vrot.slane %v47, %v85
      %v89 = vlaneseq
      %v90 = vshrl.u32 %v89, 7
      %v91 = vsub.s32 0, %v90
      %v92 = vrot.slane %v49, %v91
      %v95 = vlaneseq
      %v96 = vshrl.u32 %v95, 7
      %v97 = vsub.s32 0, %v96
      %v98 = vrot.slane %v51, %v97
      %vm100 = vcmask 1040384
      %v101 = vsel %vm100, %v45, %v86
      %vm102 = vcmask 1041408
      %v103 = vsel %vm102, %v101, %v92
      %vm104 = vcmask 1042432
      %v105 = vsel %vm104, %v103, %v98
      %v106 = vld [vmem:[#allocation2] sm:$0xf]
      %v107 = vpack.c.bf16 %v105, %v105
      %vm108 = vcmask 64512
      %v110 = vsel %vm108, %v107, 0
      %vm112 = vcmask 1043456
      %v114 = vsel %vm112, %v52, 0
      %116 = vmatprep.subr.bf16.mxu0 0
      %117 = vmatpush1.bf16.msra.mxu0 %v114
      %118 = vmatprep.subr.bf16.mxu0 0
      %119 = vmatpush1.bf16.msra.mxu0 0
      %120 = vmatprep.subr.bf16.mxu0 0
      %121 = vmatpush1.bf16.msra.mxu0 0
      %122 = vmatprep.subr.bf16.mxu0 0
      %123 = vmatpush1.bf16.msra.mxu0 0
      %124 = vmatprep.subr.bf16.mxu0 0
      %125 = vmatpush1.bf16.msra.mxu0 0
      %126 = vmatprep.subr.bf16.mxu0 0
      %127 = vmatpush1.bf16.msra.mxu0 0
      %128 = vmatprep.subr.bf16.mxu0 0
      %129 = vmatpush1.bf16.msra.mxu0 0
      %130 = vmatprep.subr.bf16.mxu0 0
      %131 = vmatpush1.bf16.msra.mxu0 0
      %132 = vmatprep.subr.bf16.mxu0 0
      %133 = vmatpush1.bf16.msra.mxu0 0
      %134 = vmatprep.subr.bf16.mxu0 0
      %135 = vmatpush1.bf16.msra.mxu0 0
      %136 = vmatprep.subr.bf16.mxu0 0
      %137 = vmatpush1.bf16.msra.mxu0 0
      %138 = vmatprep.subr.bf16.mxu0 0
      %139 = vmatpush1.bf16.msra.mxu0 0
      %140 = vmatprep.subr.bf16.mxu0 0
      %141 = vmatpush1.bf16.msra.mxu0 0
      %142 = vmatprep.subr.bf16.mxu0 0
      %143 = vmatpush1.bf16.msra.mxu0 0
      %144 = vmatprep.subr.bf16.mxu0 0
      %145 = vmatpush1.bf16.msra.mxu0 0
      %146 = vmatprep.subr.bf16.mxu0 0
      %147 = vmatpush1.bf16.msra.mxu0 0
      %148 = vmatprep.mubr.bf16.mxu0 0
      %149 = vmatmul.mubr.bf16.gmra.mrb[0].mxu0 %v110
      %v150 = vpop.f32.mrb[0].mxu0
      %v151 = vadd.f32 0.0, %v150
      %v152 = vpop.f32.mrb[0].mxu0
      %v153 = vpop.f32.mrb[0].mxu0
      %v154 = vpop.f32.mrb[0].mxu0
      %155 = vdwg.mxu0
      %v156 = vadd.f32 %v106, %v151
      %vm157 = vcmask 257024
      %158 = vst.msk [vmem:[#allocation2] sm:$0xf] %vm157, %v156
    $region25: #{tpu_custom_call.1} parent=1 // pred_fallthru
      _
    // Predicated region
    $region26: #{tpu_custom_call.1} parent=1 // pred_check
      %p159 = pneg %p28
    $region27: #{tpu_custom_call.1} parent=1 // pred_check_branch
      %161 = sbr.rel (%p159) target = $region29
    $region28: #{tpu_custom_call.1} parent=1 // pred_region
      %v162 = vld [vmem:[%s1] sm:$0x1]
      %v163 = vld [vmem:[%s2] sm:$0x1]
      %v164 = vlaneseq
      %v165 = vand.u32 %v164, 127
      %s166 = smul.u32 0, 8
      %v167 = vstv %s166
      %v168 = vadd.s32 %v167, %v165
      %vm169 = vcmp.lt.s32.totalorder %v168, 8
      %vm170 = vcmp.ge.f32.partialorder %v162, 0.0
      %vm171 = vmand %vm169, %vm170
      %v172 = vsel %vm171, 1.0, 0.0
      %vm173 = vcmp.lt.f32.partialorder %v162, 0.0
      %vm174 = vmand %vm169, %vm173
      %v175 = vsel %vm174, 1.0, 0.0
      %vm176 = vcmp.ge.f32.partialorder %v163, 0.0
      %vm177 = vmand %vm169, %vm176
      %v178 = vsel %vm177, 1.0, 0.0
      %vm179 = vcmp.lt.f32.partialorder %v163, 0.0
      %vm180 = vmand %vm169, %vm179
      %v181 = vsel %vm180, 1.0, 0.0
      %v182 = vlaneseq
      %v183 = vshrl.u32 %v182, 7
      %v184 = vadd.s32 %v167, %v183
      %vm185 = vcmp.lt.s32.totalorder %v184, 8
      %v186 = vld [vmem:[#allocation4] sm:$0xf]
      %vm187 = vmpackc.low %vm185, %vm185
      %v188 = vsel %vm187, %v186, 0
      %s189 = sld [smem:[#allocation3]]
      %vm190 = vcmask 57344
      %v191 = vsel %vm190, %v172, 0.0
      %192 = vadd.xlane.f32.xlu0 %v191
      %v193 = vpop.xlane.xlu0 %192
      %v194 = vrot.slane %v193, 4
      %v195 = vadd.f32 %v193, %v194
      %v196 = vrot.slane %v195, 2
      %v197 = vadd.f32 %v195, %v196
      %v198 = vrot.slane %v197, 1
      %v199 = vadd.f32 %v197, %v198
      %s200 = vtos %v199
      %s201 = sadd.f32 %s189, %s200
      %s202 = scalar_lea.smem [#allocation3], 0
      %203 = sst [smem:[%s202]] %s201
      %s204 = sld [smem:[#allocation3 + $0x1]]
      %v205 = vsel %vm190, %v178, 0.0
      %206 = vadd.xlane.f32.xlu0 %v205
      %v207 = vpop.xlane.xlu0 %206
      %v208 = vrot.slane %v207, 4
      %v209 = vadd.f32 %v207, %v208
      %v210 = vrot.slane %v209, 2
      %v211 = vadd.f32 %v209, %v210
      %v212 = vrot.slane %v211, 1
      %v213 = vadd.f32 %v211, %v212
      %s214 = vtos %v213
      %s215 = sadd.f32 %s204, %s214
      %s216 = scalar_lea.smem [#allocation3], 1
      %217 = sst [smem:[%s216]] %s215
      %v219 = vrot.slane %v175, 7
      %v222 = vrot.slane %v178, 6
      %v225 = vrot.slane %v181, 5
      %vm227 = vcmask 1040384
      %v228 = vsel %vm227, %v172, %v219
      %vm229 = vcmask 1041408
      %v230 = vsel %vm229, %v228, %v222
      %vm231 = vcmask 1042432
      %v232 = vsel %vm231, %v230, %v225
      %v233 = vld [vmem:[#allocation2] sm:$0xf]
      %v234 = vpack.c.bf16 %v232, %v232
      %vm235 = vcmask 64512
      %v237 = vsel %vm235, %v234, 0
      %vm239 = vcmask 1043456
      %v241 = vsel %vm239, %v188, 0
      %243 = vmatprep.subr.bf16.mxu0 0
      %244 = vmatpush1.bf16.msra.mxu0 %v241
      %245 = vmatprep.subr.bf16.mxu0 0
      %246 = vmatpush1.bf16.msra.mxu0 0
      %247 = vmatprep.subr.bf16.mxu0 0
      %248 = vmatpush1.bf16.msra.mxu0 0
      %249 = vmatprep.subr.bf16.mxu0 0
      %250 = vmatpush1.bf16.msra.mxu0 0
      %251 = vmatprep.subr.bf16.mxu0 0
      %252 = vmatpush1.bf16.msra.mxu0 0
      %253 = vmatprep.subr.bf16.mxu0 0
      %254 = vmatpush1.bf16.msra.mxu0 0
      %255 = vmatprep.subr.bf16.mxu0 0
      %256 = vmatpush1.bf16.msra.mxu0 0
      %257 = vmatprep.subr.bf16.mxu0 0
      %258 = vmatpush1.bf16.msra.mxu0 0
      %259 = vmatprep.subr.bf16.mxu0 0
      %260 = vmatpush1.bf16.msra.mxu0 0
      %261 = vmatprep.subr.bf16.mxu0 0
      %262 = vmatpush1.bf16.msra.mxu0 0
      %263 = vmatprep.subr.bf16.mxu0 0
      %264 = vmatpush1.bf16.msra.mxu0 0
      %265 = vmatprep.subr.bf16.mxu0 0
      %266 = vmatpush1.bf16.msra.mxu0 0
      %267 = vmatprep.subr.bf16.mxu0 0
      %268 = vmatpush1.bf16.msra.mxu0 0
      %269 = vmatprep.subr.bf16.mxu0 0
      %270 = vmatpush1.bf16.msra.mxu0 0
      %271 = vmatprep.subr.bf16.mxu0 0
      %272 = vmatpush1.bf16.msra.mxu0 0
      %273 = vmatprep.subr.bf16.mxu0 0
      %274 = vmatpush1.bf16.msra.mxu0 0
      %275 = vmatprep.mubr.bf16.mxu0 0
      %276 = vmatmul.mubr.bf16.gmra.mrb[0].mxu0 %v237
      %v277 = vpop.f32.mrb[0].mxu0
      %v278 = vadd.f32 0.0, %v277
      %v279 = vpop.f32.mrb[0].mxu0
      %v280 = vpop.f32.mrb[0].mxu0
      %v281 = vpop.f32.mrb[0].mxu0
      %282 = vdwg.mxu0
      %v283 = vadd.f32 %v233, %v278
      %vm284 = vcmask 257024
      %285 = vst.msk [vmem:[#allocation2] sm:$0xf] %vm284, %v283
      %v286 = vld [vmem:[#allocation2] sm:$0xf]
      %s287 = sld [smem:[#allocation3]]
      %s288 = sld [smem:[#allocation3 + $0x1]]
      %s289 = ssub.f32 8.0, %s287
      %s290 = ssub.f32 8.0, %s288
      %s291 = smax.f32 %s287, 1.0
      %v292 = vstv %s291
      %v293 = vrcp.pop %v292
      %v294 = vmul.f32 %v286, %v293
      %s295 = smax.f32 %s289, 1.0
      %v296 = vstv %s295
      %v297 = vrcp.pop %v296
      %v298 = vmul.f32 %v286, %v297
      %s299 = smax.f32 %s288, 1.0
      %v300 = vstv %s299
      %v301 = vrcp.pop %v300
      %v302 = vmul.f32 %v286, %v301
      %s303 = smax.f32 %s290, 1.0
      %v304 = vstv %s303
      %v305 = vrcp.pop %v304
      %v306 = vmul.f32 %v286, %v305
      %p307 = scmp.gt.f32.partialorder %s287, 0.0
      %p308 = scmp.gt.f32.partialorder %s288, 0.0
      %p309 = pnand %p307, %p308
      %p310 = pneg %p309
      %v312 = vrot.slane %v302, 2
      %v314 = vmul.f32 %v294, %v312
      %vm315 = vcmask 253952
      %v316 = vsel %vm315, %v314, 0.0
      %317 = vadd.xlane.f32.xlu0 %v316
      %v318 = vpop.xlane.xlu0 %317
      %v319 = vrot.slane %v318, 4
      %v320 = vadd.f32 %v318, %v319
      %v321 = vrot.slane %v320, 2
      %v322 = vadd.f32 %v320, %v321
      %v323 = vrot.slane %v322, 1
      %v324 = vadd.f32 %v322, %v323
      %s325 = vtos %v324
      %v326 = vmul.f32 %v294, %v294
      %v327 = vsel %vm315, %v326, 0.0
      %328 = vadd.xlane.f32.xlu0 %v327
      %v329 = vpop.xlane.xlu0 %328
      %v330 = vrot.slane %v329, 4
      %v331 = vadd.f32 %v329, %v330
      %v332 = vrot.slane %v331, 2
      %v333 = vadd.f32 %v331, %v332
      %v334 = vrot.slane %v333, 1
      %v335 = vadd.f32 %v333, %v334
      %s336 = vtos %v335
      %v337 = vstv %s336
      %v338 = vrsqrt.pop %v337
      %v339 = vmul.f32 %v337, %v338
      %vm340 = vcmp.eq.f32.partialorder %v337, inf
      %v341 = vsel %vm340, %v337, %v339
      %vm342 = vcmp.eq.f32.partialorder %v337, 0.0
      %v343 = vand.u32 %v337, 2147483648
      %v344 = vsel %vm342, %v343, %v341
      %s345 = vtos %v344
      %v346 = vmul.f32 %v302, %v302
      %v348 = vrot.slane %v346, 2
      %v350 = vsel %vm315, %v348, 0.0
      %351 = vadd.xlane.f32.xlu0 %v350
      %v352 = vpop.xlane.xlu0 %351
      %v353 = vrot.slane %v352, 4
      %v354 = vadd.f32 %v352, %v353
      %v355 = vrot.slane %v354, 2
      %v356 = vadd.f32 %v354, %v355
      %v357 = vrot.slane %v356, 1
      %v358 = vadd.f32 %v356, %v357
      %s359 = vtos %v358
      %v360 = vstv %s359
      %v361 = vrsqrt.pop %v360
      %v362 = vmul.f32 %v360, %v361
      %vm363 = vcmp.eq.f32.partialorder %v360, inf
      %v364 = vsel %vm363, %v360, %v362
      %vm365 = vcmp.eq.f32.partialorder %v360, 0.0
      %v366 = vand.u32 %v360, 2147483648
      %v367 = vsel %vm365, %v366, %v364
      %s368 = vtos %v367
      %s369 = smul.f32 %s345, %s368
      %s370 = smax.f32 %s369, 1e-08
      %v371 = vstv %s370
      %v372 = vrcp.pop %v371
      %s373 = vtos %v372
      %s374 = smul.f32 %s325, %s373
      %s375 = ssub.f32 1.0, %s374
      %s376 = scalar_select %p310, %s375, 0.0
      %p377 = scmp.gt.f32.partialorder %s289, 0.0
      %p378 = scmp.gt.f32.partialorder %s290, 0.0
      %p379 = pnand %p377, %p378
      %p380 = pneg %p379
      %v382 = vrot.slane %v306, 2
      %v384 = vmul.f32 %v298, %v382
      %v386 = vrot.slane %v384, 1
      %v388 = vsel %vm315, %v386, 0.0
      %389 = vadd.xlane.f32.xlu0 %v388
      %v390 = vpop.xlane.xlu0 %389
      %v391 = vrot.slane %v390, 4
      %v392 = vadd.f32 %v390, %v391
      %v393 = vrot.slane %v392, 2
      %v394 = vadd.f32 %v392, %v393
      %v395 = vrot.slane %v394, 1
      %v396 = vadd.f32 %v394, %v395
      %s397 = vtos %v396
      %v398 = vmul.f32 %v298, %v298
      %v400 = vrot.slane %v398, 1
      %v402 = vsel %vm315, %v400, 0.0
      %403 = vadd.xlane.f32.xlu0 %v402
      %v404 = vpop.xlane.xlu0 %403
      %v405 = vrot.slane %v404, 4
      %v406 = vadd.f32 %v404, %v405
      %v407 = vrot.slane %v406, 2
      %v408 = vadd.f32 %v406, %v407
      %v409 = vrot.slane %v408, 1
      %v410 = vadd.f32 %v408, %v409
      %s411 = vtos %v410
      %v412 = vstv %s411
      %v413 = vrsqrt.pop %v412
      %v414 = vmul.f32 %v412, %v413
      %vm415 = vcmp.eq.f32.partialorder %v412, inf
      %v416 = vsel %vm415, %v412, %v414
      %vm417 = vcmp.eq.f32.partialorder %v412, 0.0
      %v418 = vand.u32 %v412, 2147483648
      %v419 = vsel %vm417, %v418, %v416
      %s420 = vtos %v419
      %v421 = vmul.f32 %v306, %v306
      %v423 = vrot.slane %v421, 3
      %v425 = vsel %vm315, %v423, 0.0
      %426 = vadd.xlane.f32.xlu0 %v425
      %v427 = vpop.xlane.xlu0 %426
      %v428 = vrot.slane %v427, 4
      %v429 = vadd.f32 %v427, %v428
      %v430 = vrot.slane %v429, 2
      %v431 = vadd.f32 %v429, %v430
      %v432 = vrot.slane %v431, 1
      %v433 = vadd.f32 %v431, %v432
      %s434 = vtos %v433
      %v435 = vstv %s434
      %v436 = vrsqrt.pop %v435
      %v437 = vmul.f32 %v435, %v436
      %vm438 = vcmp.eq.f32.partialorder %v435, inf
      %v439 = vsel %vm438, %v435, %v437
      %vm440 = vcmp.eq.f32.partialorder %v435, 0.0
      %v441 = vand.u32 %v435, 2147483648
      %v442 = vsel %vm440, %v441, %v439
      %s443 = vtos %v442
      %s444 = smul.f32 %s420, %s443
      %s445 = smax.f32 %s444, 1e-08
      %v446 = vstv %s445
      %v447 = vrcp.pop %v446
      %s448 = vtos %v447
      %s449 = smul.f32 %s397, %s448
      %s450 = ssub.f32 1.0, %s449
      %s451 = scalar_select %p380, %s450, 0.0
      %s452 = smul.f32 %s287, %s376
      %s453 = smul.f32 %s289, %s451
      %s454 = sadd.f32 %s452, %s453
      %v455 = vrcp.pop 8.0
      %s456 = vtos %v455
      %s457 = smul.f32 %s454, %s456
      %s458 = scalar_lea.smem [#allocation7], 0
      %459 = sst [smem:[%s458]] %s457
    $region29: #{tpu_custom_call.1} parent=1 // pred_fallthru
      _
    // Predicated region
    $region30: #{tpu_custom_call.1} parent=1 // pred_check
      _
    $region31: #{tpu_custom_call.1} parent=1 // pred_check_branch
      %461 = sbr.rel (0) target = $region33
    $region32: #{tpu_custom_call.1} parent=1 // pred_region
      %s463 = ssub.s32 16, 16
      %464 = vsyncadd [#allocation6], %s463
      %467 = dma.smem_to_hbm [#allocation7], 16, %s3, [#allocation6]
    $region33: #{tpu_custom_call.1} parent=1 // pred_fallthru
      _
    // Predicated region
    $region34: #{tpu_custom_call.1} parent=1 // pred_check
      _
    $region35: #{tpu_custom_call.1} parent=1 // pred_check_branch
      %469 = sbr.rel (0) target = $region37
    $region36: #{tpu_custom_call.1} parent=1 // pred_region
      %470 = dma.done [#allocation6], 16
    $region37: #{tpu_custom_call.1} parent=1 // pred_fallthru
      _
    %471 = sfence
    %472 = vsyncpa [#allocation5], 1
    %473 = vsyncpa [#allocation6], 1

</llo_original>
